<compile_context>
chip_gen: v7x
topology: tpu7x:2x2x1
jax: 0.10.0
libtpu: 0.0.40
codegen_flags: <defaults>
</compile_context>

<pallas_src>
import math
import functools

import numpy as np
import jax
import jax.numpy as jnp
from jax import lax
from jax.experimental import pallas as pl
from jax.experimental.pallas import tpu as pltpu


# --------------------------------------------------------------------------- #
# Tiled matmul kernel:  y = x @ w    (w already in (K, N) layout)
# --------------------------------------------------------------------------- #
def _matmul_kernel(x_ref, w_ref, o_ref, acc_ref):
    @pl.when(pl.program_id(2) == 0)
    def _init():
        acc_ref[...] = jnp.zeros_like(acc_ref)

    acc_ref[...] += jnp.dot(x_ref[...], w_ref[...],
                            preferred_element_type=jnp.float32)

    @pl.when(pl.program_id(2) == pl.num_programs(2) - 1)
    def _store():
        o_ref[...] = acc_ref[...].astype(o_ref.dtype)


def _pick_tile(dim, prefs):
    for t in prefs:
        if dim % t == 0:
            return t
    return dim  # small / non-divisible dim -> use the full extent (allowed by Pallas)


def matmul_pallas(x, w, out_dtype=None):
    """x: (M, K) @ w: (K, N) -> (M, N); bf16-friendly, f32 accumulation."""
    m, k = x.shape
    k2, n = w.shape
    assert k == k2
    out_dtype = out_dtype or x.dtype
    tm = _pick_tile(m, (256, 128))
    tn = _pick_tile(n, (256, 128))
    tk = _pick_tile(k, (512, 256, 128))
    grid = (m // tm, n // tn, k // tk)
    return pl.pallas_call(
        _matmul_kernel,
        out_shape=jax.ShapeDtypeStruct((m, n), out_dtype),
        grid=grid,
        in_specs=[pl.BlockSpec((tm, tk), lambda i, j, kk: (i, kk)),
                  pl.BlockSpec((tk, tn), lambda i, j, kk: (kk, j))],
        out_specs=pl.BlockSpec((tm, tn), lambda i, j, kk: (i, j)),
        scratch_shapes=[pltpu.VMEM((tm, tn), jnp.float32)],
        compiler_params=pltpu.CompilerParams(
            dimension_semantics=("parallel", "parallel", "arbitrary")),
    )(x, w)


# --------------------------------------------------------------------------- #
# SeqAttention kernel: one batch element (all heads) per grid step, vectorized.
# --------------------------------------------------------------------------- #
def _seq_attn_kernel(q_ref, k_ref, v_ref, ck_ref, cv_ref, pe_c_ref, pe_n_ref,
                     o_ref, *, span, c_win, c_rate, scale):
    # q_ref : (1, H, M, D)    k_ref/v_ref : (1, H, M+span, D)
    # ck_ref/cv_ref : (1, H, Lc, D)   pe_c_ref : (H, C+1, D)   pe_n_ref : (H, span, D)
    # o_ref : (1, M, H*D)
    q = q_ref[0] * scale            # fold 1/sqrt(D) into Q once (bf16, exact for pow2 D)
    k = k_ref[0]
    v = v_ref[0]
    ck = ck_ref[0]
    cv = cv_ref[0]
    pe_c = pe_c_ref[...]
    pe_n = pe_n_ref[...]

    heads, m_len, d = q.shape
    lc = ck.shape[1]
    f32 = jnp.float32

    # Full-coordinate scores, bf16 inputs / f32 accumulate (MXU).
    s_n = jnp.einsum('hmd,hnd->hmn', q, k, preferred_element_type=f32)    # (H, M, M+span)
    s_c = jnp.einsum('hmd,hnd->hmn', q, ck, preferred_element_type=f32)   # (H, M, Lc)
    # Relative-position scores in band coordinates (one matmul each).
    pe_n_band = jnp.einsum('hmd,hld->hml', q, pe_n, preferred_element_type=f32)  # (H, M, span)
    pe_c_band = jnp.einsum('hmd,hld->hml', q, pe_c, preferred_element_type=f32)  # (H, M, C+1)

    # Band structure (vectorized equivalent of unskew / unskew_step).
    rows_n = lax.broadcasted_iota(jnp.int32, (m_len, m_len + span), 0)
    cols_n = lax.broadcasted_iota(jnp.int32, (m_len, m_len + span), 1)
    rel_n = cols_n - rows_n                       # key offset relative to query m
    rows_c = lax.broadcasted_iota(jnp.int32, (m_len, lc), 0)
    cols_c = lax.broadcasted_iota(jnp.int32, (m_len, lc), 1)
    rel_c = cols_c - rows_c // c_rate             # ckey offset relative to m // c

    # Add positional scores along each diagonal (in-kernel "skew" of Q @ key_pe).
    # NOTE: unrolls over the band width; fine for small spans. For very large
    # attn_lim a pre-skewed PE input would be preferable.
    for l in range(span):
        s_n = jnp.where(rel_n[None] == l, s_n + pe_n_band[:, :, l:l + 1], s_n)
    for j in range(c_win):
        s_c = jnp.where(rel_c[None] == j, s_c + pe_c_band[:, :, j:j + 1], s_c)

    neg = jnp.float32(-1e30)
    s_n = jnp.where((rel_n[None] >= 0) & (rel_n[None] < span), s_n, neg)
    s_c = jnp.where((rel_c[None] >= 0) & (rel_c[None] < c_win), s_c, neg)

    # Joint softmax over [compressed | near] (f32 statistics).
    mx = jnp.maximum(jnp.max(s_n, axis=-1, keepdims=True),
                     jnp.max(s_c, axis=-1, keepdims=True))
    e_n = jnp.exp(s_n - mx)
    e_c = jnp.exp(s_c - mx)
    denom = jnp.sum(e_n, axis=-1, keepdims=True) + jnp.sum(e_c, axis=-1, keepdims=True)
    inv = pl.reciprocal(denom, approx=True)
    p_n = (e_n * inv).astype(v.dtype)
    p_c = (e_c * inv).astype(cv.dtype)

    # Output: masked full-coordinate probs @ values (no skew needed).
    out = (jnp.einsum('hmn,hnd->hmd', p_n, v, preferred_element_type=f32)
           + jnp.einsum('hmn,hnd->hmd', p_c, cv, preferred_element_type=f32))  # (H, M, D)

    # Single lane-dense store, directly in (M, H*D) head-concatenated layout.
    o_ref[0] = jnp.concatenate([out[h] for h in range(heads)],
                               axis=-1).astype(o_ref.dtype)


def seq_attn_pallas(q, k, v, ck, cv, pe_c, pe_n, cfg):
    b, heads, m_len, d = q.shape
    mk = k.shape[2]
    lc = ck.shape[2]
    span = cfg["attn_lim"]
    c_rate = cfg["compress_rate"]
    c_win = cfg["compress_size"] // c_rate + 1

    kernel = functools.partial(_seq_attn_kernel, span=span, c_win=c_win,
                               c_rate=c_rate, scale=1.0 / math.sqrt(d))
    return pl.pallas_call(
        kernel,
        out_shape=jax.ShapeDtypeStruct((b, m_len, heads * d), jnp.bfloat16),
        grid=(b,),
        in_specs=[
            pl.BlockSpec((1, heads, m_len, d), lambda i: (i, 0, 0, 0)),
            pl.BlockSpec((1, heads, mk, d), lambda i: (i, 0, 0, 0)),
            pl.BlockSpec((1, heads, mk, d), lambda i: (i, 0, 0, 0)),
            pl.BlockSpec((1, heads, lc, d), lambda i: (i, 0, 0, 0)),
            pl.BlockSpec((1, heads, lc, d), lambda i: (i, 0, 0, 0)),
            pl.BlockSpec((heads, c_win, d), lambda i: (0, 0, 0)),
            pl.BlockSpec((heads, span, d), lambda i: (0, 0, 0)),
        ],
        out_specs=pl.BlockSpec((1, m_len, heads * d), lambda i: (i, 0, 0)),
        compiler_params=pltpu.CompilerParams(dimension_semantics=("parallel",)),
    )(q, k, v, ck, cv, pe_c, pe_n)


# --------------------------------------------------------------------------- #
# Multi-head wrapper (reshapes are XLA glue; all matmuls run in Pallas kernels)
# --------------------------------------------------------------------------- #
def multi_head_seq_attention(params, query, key, value, ckey, cvalue, cfg):
    b, m_len, hid = query.shape
    heads, d = cfg["nheads"], cfg["head_dim"]
    span = cfg["attn_lim"]
    c_rate = cfg["compress_rate"]
    c_num = cfg["compress_size"] // c_rate
    bf16 = jnp.bfloat16

    wq = params["wq"].T.astype(bf16)   # (hid, H*D)
    wk = params["wk"].T.astype(bf16)
    wv = params["wv"].T.astype(bf16)
    wo = params["wo"].T.astype(bf16)   # (H*D, hid)

    def proj_heads(x, w_t):
        bx, n, _ = x.shape
        y = matmul_pallas(x.reshape(bx * n, hid).astype(bf16), w_t, out_dtype=bf16)
        return y.reshape(bx, n, heads, d).transpose(0, 2, 1, 3)   # (B, H, n, D)

    q = proj_heads(query, wq)          # (B, H, M, D)
    k = proj_heads(key, wk)            # (B, H, M+span, D)
    v = proj_heads(value, wv)
    ck = proj_heads(ckey, wk)          # proj_key shared with ckey (as in PyTorch)
    cv = proj_heads(cvalue, wv)        # proj_val shared with cvalue

    key_pe = params["key_pe"][0]                                   # (D, span + C + 1)
    pe_c = jnp.broadcast_to(key_pe[:, :c_num + 1].T[None],
                            (heads, c_num + 1, d)).astype(bf16)
    pe_n = jnp.broadcast_to(key_pe[:, c_num + 1:].T[None],
                            (heads, span, d)).astype(bf16)

    attn_out = seq_attn_pallas(q, k, v, ck, cv, pe_c, pe_n, cfg)   # (B, M, H*D) bf16
    out = matmul_pallas(attn_out.reshape(b * m_len, heads * d), wo,
                        out_dtype=jnp.float32)
    # TODO(synk): nn.Dropout treated as identity (p = 0.0 / eval mode).
    return out.reshape(b, m_len, hid), 0.0


# --------------------------------------------------------------------------- #
# Pure-JAX f32 reference mirroring the PyTorch skew/unskew code (verification)
# --------------------------------------------------------------------------- #
def skew_ref(x, pad_value):
    b, m, l = x.shape
    x = jnp.pad(x, ((0, 0), (0, 0), (0, m + 1)), constant_values=pad_value)
    x = x.reshape(b, -1)[:, :-m]
    return x.reshape(b, m, m + l)


def unskew_ref(x):
    b, m, ml = x.shape
    l = ml - m
    x = x.reshape(b, -1)
    x = jnp.pad(x, ((0, 0), (0, m)))
    x = x.reshape(b, m, m + l + 1)
    return x[:, :, :l]


def skew_step_ref(x, step, pad_value):
    b, m, _ = x.shape
    x = x.reshape(b, m // step, step, -1)
    x = jnp.swapaxes(x, 1, 2).reshape(b * step, m // step, -1)
    x = skew_ref(x, pad_value)
    x = x[:, :, :-1]
    x = x.reshape(b, step, m // step, -1)
    x = jnp.swapaxes(x, 1, 2).reshape(b, m, -1)
    return x


def unskew_step_ref(x, step):
    b, m, _ = x.shape
    x = x.reshape(b, m // step, step, -1)
    x = jnp.swapaxes(x, 1, 2).reshape(b * step, m // step, -1)
    x = jnp.pad(x, ((0, 0), (0, 0), (0, 1)))
    x = unskew_ref(x)
    x = x.reshape(b, step, m // step, -1)
    x = jnp.swapaxes(x, 1, 2).reshape(b, m, -1)
    return x


def mha_reference(params, query, key, value, ckey, cvalue, cfg):
    hp = lax.Precision.HIGHEST
    b, m_len, hid = query.shape
    nh, hd = cfg["nheads"], cfg["head_dim"]
    c = cfg["compress_rate"]
    cc = cfg["compress_size"] // c

    def head_reshape(x):
        bb, n, _ = x.shape
        x = x.reshape(bb, n, nh, hd).transpose(0, 2, 1, 3)
        return x.reshape(bb * nh, n, hd)

    def proj(x, w):
        return head_reshape(jnp.einsum("bnh,oh->bno", x, w, precision=hp))

    q = proj(query, params["wq"])
    k = proj(key, params["wk"])
    v = proj(value, params["wv"])
    ck = proj(ckey, params["wk"])
    cv = proj(cvalue, params["wv"])

    attn = jnp.matmul(q, jnp.swapaxes(k, -1, -2), precision=hp)
    attn = unskew_ref(attn)
    cattn = jnp.matmul(q, jnp.swapaxes(ck, -1, -2), precision=hp)
    cattn = unskew_step_ref(cattn, c)
    attn = jnp.concatenate([cattn, attn], axis=-1)
    attn = attn + jnp.matmul(q, params["key_pe"], precision=hp)
    attn = attn / math.sqrt(hd)
    attn = jax.nn.softmax(attn, axis=-1)
    cattn = attn[:, :, :cc + 1]
    attn = attn[:, :, cc + 1:]
    cattn = skew_step_ref(cattn, c, 0.0)
    out = jnp.matmul(cattn, cv, precision=hp)
    out = out + jnp.matmul(skew_ref(attn, 0.0), v, precision=hp)
    out = out.reshape(b, nh, m_len, hd).transpose(0, 2, 1, 3).reshape(b, m_len, nh * hd)
    out = jnp.einsum("bno,ho->bnh", out, params["wo"], precision=hp)
    return out


# --------------------------------------------------------------------------- #
if __name__ == "__main__":
    cfg = dict(hid_sz=32, nheads=2, head_dim=16, attn_lim=16,
               compress_size=8, compress_rate=4, dropout=0.0)

    B, M = 2, 8
    L = cfg["attn_lim"]
    C = cfg["compress_size"] // cfg["compress_rate"]
    Lc = C + M // cfg["compress_rate"]          # compressed key/value length
    H = cfg["hid_sz"]
    KD = cfg["nheads"] * cfg["head_dim"]

    root = jax.random.PRNGKey(0)
    keys = jax.random.split(root, 10)
    ws = 1.0 / math.sqrt(H)
    params = {
        "wq": jax.random.uniform(keys[0], (KD, H), jnp.float32, -ws, ws),
        "wk": jax.random.uniform(keys[1], (KD, H), jnp.float32, -ws, ws),
        "wv": jax.random.uniform(keys[2], (KD, H), jnp.float32, -ws, ws),
        "wo": jax.random.uniform(keys[3], (H, KD), jnp.float32, -ws, ws),
        "key_pe": jax.random.normal(keys[4], (1, cfg["head_dim"], L + C + 1),
                                    jnp.float32) / math.sqrt(cfg["head_dim"]),
    }

    query = jax.random.normal(keys[5], (B, M, H), jnp.float32)
    key_in = jax.random.normal(keys[6], (B, M + L, H), jnp.float32)
    value_in = jax.random.normal(keys[7], (B, M + L, H), jnp.float32)
    ckey_in = jax.random.normal(keys[8], (B, Lc, H), jnp.float32)
    cvalue_in = jax.random.normal(keys[9], (B, Lc, H), jnp.float32)

    out, aux_loss = multi_head_seq_attention(
        params, query, key_in, value_in, ckey_in, cvalue_in, cfg)
    out = jax.block_until_ready(out)

    ref = jax.block_until_ready(
        mha_reference(params, query, key_in, value_in, ckey_in, cvalue_in, cfg))

    # bf16-in / f32-accumulate kernels vs. f32 reference -> slightly looser tolerance.
    if not np.allclose(np.asarray(out), np.asarray(ref), rtol=2e-2, atol=2e-2):
        raise AssertionError("Pallas output does not match reference")

    print("KERNEL_OK")
</pallas_src>

<mosaic_0001>
module attributes {stable_mosaic.version = 11 : i64} {
  func.func @_matmul_kernel(%arg0: i32, %arg1: i32, %arg2: i32, %arg3: memref<16x32xbf16, #tpu.memory_space<vmem>>, %arg4: memref<32x32xbf16, #tpu.memory_space<vmem>>, %arg5: memref<16x32xbf16, #tpu.memory_space<vmem>>, %arg6: memref<16x32xf32, #tpu.memory_space<vmem>>) attributes {dimension_semantics = [#tpu.dimension_semantics<parallel>, #tpu.dimension_semantics<parallel>, #tpu.dimension_semantics<arbitrary>], iteration_bounds = array<i64: 1, 1, 1>, scalar_prefetch = 0 : i64, scratch_operands = 1 : i64, tpu.core_type = #tpu.core_type<tc>, window_params = [{transform_indices = @transform_0, window_bounds = array<i64: 16, 32>}, {transform_indices = @transform_1, window_bounds = array<i64: 32, 32>}, {transform_indices = @transform_2, window_bounds = array<i64: 16, 32>}]} {
    %c0_i32 = arith.constant 0 : i32
    %0 = arith.cmpi eq, %arg2, %c0_i32 : i32
    %1 = arith.extui %0 : i1 to i32
    %c0_i32_0 = arith.constant 0 : i32
    %2 = arith.cmpi ne, %1, %c0_i32_0 : i32
    scf.if %2 {
      %cst_10 = arith.constant 0.000000e+00 : f32
      %12 = vector.broadcast %cst_10 : f32 to vector<16x32xf32>
      %c0_11 = arith.constant 0 : index
      %c0_12 = arith.constant 0 : index
      %13 = vector.load %arg6[%c0_11, %c0_12] : memref<16x32xf32, #tpu.memory_space<vmem>>, vector<16x32xf32>
      tpu.vector_store %arg6[%c0_11, %c0_12], %12 {strides = array<i32>} : memref<16x32xf32, #tpu.memory_space<vmem>>, vector<16x32xf32>,
    } else {
    }
    %c0 = arith.constant 0 : index
    %c0_1 = arith.constant 0 : index
    %3 = vector.load %arg6[%c0, %c0_1] : memref<16x32xf32, #tpu.memory_space<vmem>>, vector<16x32xf32>
    %c0_2 = arith.constant 0 : index
    %c0_3 = arith.constant 0 : index
    %4 = vector.load %arg3[%c0_2, %c0_3] : memref<16x32xbf16, #tpu.memory_space<vmem>>, vector<16x32xbf16>
    %c0_4 = arith.constant 0 : index
    %c0_5 = arith.constant 0 : index
    %5 = vector.load %arg4[%c0_4, %c0_5] : memref<32x32xbf16, #tpu.memory_space<vmem>>, vector<32x32xbf16>
    %cst = arith.constant dense<0.000000e+00> : vector<16x32xf32>
    %6 = tpu.matmul %4, %5, %cst {dimension_numbers = #tpu.dot_dimension_numbers<[1], [0], [0], [1], [0, 0, 1, 1], [], []>} : vector<16x32xbf16>, vector<32x32xbf16>, vector<16x32xf32> -> vector<16x32xf32>
    %7 = arith.addf %3, %6 : vector<16x32xf32>
    %c0_6 = arith.constant 0 : index
    %c0_7 = arith.constant 0 : index
    %8 = vector.load %arg6[%c0_6, %c0_7] : memref<16x32xf32, #tpu.memory_space<vmem>>, vector<16x32xf32>
    tpu.vector_store %arg6[%c0_6, %c0_7], %7 {strides = array<i32>} : memref<16x32xf32, #tpu.memory_space<vmem>>, vector<16x32xf32>,
    %c0_i32_8 = arith.constant 0 : i32
    %9 = arith.cmpi eq, %arg2, %c0_i32_8 : i32
    %10 = arith.extui %9 : i1 to i32
    %c0_i32_9 = arith.constant 0 : i32
    %11 = arith.cmpi ne, %10, %c0_i32_9 : i32
    scf.if %11 {
      %c0_10 = arith.constant 0 : index
      %c0_11 = arith.constant 0 : index
      %12 = vector.load %arg6[%c0_10, %c0_11] : memref<16x32xf32, #tpu.memory_space<vmem>>, vector<16x32xf32>
      %13 = arith.truncf %12 : vector<16x32xf32> to vector<16x32xbf16>
      %c0_12 = arith.constant 0 : index
      %c0_13 = arith.constant 0 : index
      %14 = vector.load %arg5[%c0_12, %c0_13] : memref<16x32xbf16, #tpu.memory_space<vmem>>, vector<16x32xbf16>
      tpu.vector_store %arg5[%c0_12, %c0_13], %13 {strides = array<i32>} : memref<16x32xbf16, #tpu.memory_space<vmem>>, vector<16x32xbf16>,
    } else {
    }
    return
  }
  func.func @transform_0(%arg0: i32, %arg1: i32, %arg2: i32) -> (i32, i32) {
    %c0_i32 = arith.constant 0 : i32
    return %arg0, %arg2 : i32, i32
  }
  func.func @transform_1(%arg0: i32, %arg1: i32, %arg2: i32) -> (i32, i32) {
    %c0_i32 = arith.constant 0 : i32
    return %arg2, %arg1 : i32, i32
  }
  func.func @transform_2(%arg0: i32, %arg1: i32, %arg2: i32) -> (i32, i32) {
    %c0_i32 = arith.constant 0 : i32
    return %arg0, %arg1 : i32, i32
  }
}

</mosaic_0001>

<llo_original>
// kernel: tpu_custom_call.1
$region0: #{tpu_custom_call.1}
  #allocation0 [shape = 'u32[]', space=smem, size = 0x4, offset = 0x4, fixed_abs, tag = 'smem constant byte address 0x4 - core index']
  #allocation1 [shape = 'u32[144,128]{1,0:T(1,128)}', space=vmem, size = 0x12000, scoped, tag = 'internal scratch']
  #allocation2 [shape = 'f32[16,32]{1,0:T(8,128)}', space=vmem, size = 0x2000, scoped, tag = 'scratch operand']
  %s0 = inlined_call_operand.hbm [shape: bf16[16,32], index: 0, kind: input, shape index: {}]
  %s1 = inlined_call_operand.hbm [shape: bf16[32,32], index: 1, kind: input, shape index: {}]
  %s2 = inlined_call_operand.hbm [shape: bf16[16,32], index: 2, kind: output, shape index: {}]
  %s3 = sld [smem:[#allocation0]]
  $region34: #{tpu_custom_call.1} parent=0
    _
  %s5 = ssub.s32 1, %s3
  %s6 = scalar_select 0, %s5, %s3
  $region1: #{tpu_custom_call.1} parent=0
    #allocation3 [shape = 'u8[4096]{0}', space=vmem, size = 0x1000, scoped, tag = 'input window, operand 0, single buffered']
    #allocation4 [shape = 's32[1]{0}', space=sflag, size = 0x4, scoped, tag = 'scoped memory for tpu_custom_call.1']
    #allocation5 [shape = 's32[1]{0}', space=sflag, size = 0x4, scoped, tag = 'scoped memory for tpu_custom_call.1']
    #allocation6 [shape = 'u8[8192]{0}', space=vmem, size = 0x2000, scoped, tag = 'input window, operand 1, single buffered']
    #allocation7 [shape = 's32[1]{0}', space=sflag, size = 0x4, scoped, tag = 'scoped memory for tpu_custom_call.1']
    #allocation8 [shape = 'u8[4096]{0}', space=vmem, size = 0x1000, scoped, tag = 'output window, operand 0, single buffered']
    %7 = vsyncpa [#allocation4], 0
    %8 = vsyncpa [#allocation7], 0
    %9 = vsyncpa [#allocation5], 0
    // Predicated region
    $region2: #{tpu_custom_call.1} parent=1 // pred_check
      _
    $region3: #{tpu_custom_call.1} parent=1 // pred_check_branch
      %11 = sbr.rel (0) target = $region5
    $region4: #{tpu_custom_call.1} parent=1 // pred_region
      %s13 = ssub.s32 128, 128
      %14 = vsyncadd [#allocation4], %s13
      %s15 = sshll.u32 [#allocation3], 4
      %s16 = int_to_ptr.vmem [resolvable:$true] %s15
      %21 = dma.hbm_to_vmem [thread:$0]  %s0, 128, %s16, [#allocation4], 64, 64, 4
    $region5: #{tpu_custom_call.1} parent=1 // pred_fallthru
      _
    // Predicated region
    $region6: #{tpu_custom_call.1} parent=1 // pred_check
      _
    $region7: #{tpu_custom_call.1} parent=1 // pred_check_branch
      %23 = sbr.rel (0) target = $region9
    $region8: #{tpu_custom_call.1} parent=1 // pred_region
      %s25 = ssub.s32 256, 256
      %26 = vsyncadd [#allocation7], %s25
      %s27 = sshll.u32 [#allocation6], 4
      %s28 = int_to_ptr.vmem [resolvable:$true] %s27
      %33 = dma.hbm_to_vmem [thread:$0]  %s1, 256, %s28, [#allocation7], 64, 64, 4
    $region9: #{tpu_custom_call.1} parent=1 // pred_fallthru
      _
    // Predicated region
    $region10: #{tpu_custom_call.1} parent=1 // pred_check
      _
    $region11: #{tpu_custom_call.1} parent=1 // pred_check_branch
      %35 = sbr.rel (0) target = $region13
    $region12: #{tpu_custom_call.1} parent=1 // pred_region
      %36 = dma.done [#allocation4], 128
    $region13: #{tpu_custom_call.1} parent=1 // pred_fallthru
      _
    // Predicated region
    $region14: #{tpu_custom_call.1} parent=1 // pred_check
      _
    $region15: #{tpu_custom_call.1} parent=1 // pred_check_branch
      %38 = sbr.rel (0) target = $region17
    $region16: #{tpu_custom_call.1} parent=1 // pred_region
      %39 = dma.done [#allocation7], 256
    $region17: #{tpu_custom_call.1} parent=1 // pred_fallthru
      _
    %p41 = scmp.eq.s32.totalorder 0, 0
    // Predicated region
    $region18: #{tpu_custom_call.1} parent=1 // pred_check
      %p42 = pneg %p41
    $region19: #{tpu_custom_call.1} parent=1 // pred_check_branch
      %44 = sbr.rel (%p42) target = $region21
    $region20: #{tpu_custom_call.1} parent=1 // pred_region
      %vm45 = vcmask 261120
      %46 = vst.msk [vmem:[#allocation2] sm:$0xff] %vm45, 0.0
      %47 = vst.msk [vmem:[#allocation2 + $0x8] sm:$0xff] %vm45, 0.0
    $region21: #{tpu_custom_call.1} parent=1 // pred_fallthru
      _
    %v48 = vld [vmem:[#allocation2] sm:$0xff]
    %v49 = vld [vmem:[#allocation2 + $0x8] sm:$0xff]
    %v50 = vld [vmem:[#allocation3] sm:$0xf]
    %v51 = vld [vmem:[#allocation3 + $0x4] sm:$0xf]
    %v52 = vld [vmem:[#allocation6] sm:$0xf]
    %v53 = vld [vmem:[#allocation6 + $0x4] sm:$0xf]
    %v54 = vld [vmem:[#allocation6 + $0x8] sm:$0xf]
    %v55 = vld [vmem:[#allocation6 + $0xc] sm:$0xf]
    %v58 = vunpack.c.l.b16 %v50
    %v59 = vunpack.c.l.b16 %v51
    %v60 = vpack.c.b16 %v59, %v58
    %v65 = vunpack.c.l.b16 %v52
    %v66 = vunpack.c.l.b16 %v53
    %v67 = vunpack.c.l.b16 %v54
    %v68 = vunpack.c.l.b16 %v55
    %v69 = vpack.c.b16 %v66, %v65
    %v70 = vpack.c.b16 %v68, %v67
    %vm73 = vcmask 261120
    %v75 = vsel %vm73, %v60, 0
    %77 = vmatprep.subr.bf16.mxu0 0
    %78 = vmatpush1.bf16.msra.mxu0 %v69
    %79 = vmatprep.subr.bf16.mxu0 0
    %80 = vmatpush1.bf16.msra.mxu0 %v70
    %81 = vmatprep.subr.bf16.mxu0 0
    %82 = vmatpush1.bf16.msra.mxu0 0
    %83 = vmatprep.subr.bf16.mxu0 0
    %84 = vmatpush1.bf16.msra.mxu0 0
    %85 = vmatprep.subr.bf16.mxu0 0
    %86 = vmatpush1.bf16.msra.mxu0 0
    %87 = vmatprep.subr.bf16.mxu0 0
    %88 = vmatpush1.bf16.msra.mxu0 0
    %89 = vmatprep.subr.bf16.mxu0 0
    %90 = vmatpush1.bf16.msra.mxu0 0
    %91 = vmatprep.subr.bf16.mxu0 0
    %92 = vmatpush1.bf16.msra.mxu0 0
    %93 = vmatprep.subr.bf16.mxu0 0
    %94 = vmatpush1.bf16.msra.mxu0 0
    %95 = vmatprep.subr.bf16.mxu0 0
    %96 = vmatpush1.bf16.msra.mxu0 0
    %97 = vmatprep.subr.bf16.mxu0 0
    %98 = vmatpush1.bf16.msra.mxu0 0
    %99 = vmatprep.subr.bf16.mxu0 0
    %100 = vmatpush1.bf16.msra.mxu0 0
    %101 = vmatprep.subr.bf16.mxu0 0
    %102 = vmatpush1.bf16.msra.mxu0 0
    %103 = vmatprep.subr.bf16.mxu0 0
    %104 = vmatpush1.bf16.msra.mxu0 0
    %105 = vmatprep.subr.bf16.mxu0 0
    %106 = vmatpush1.bf16.msra.mxu0 0
    %107 = vmatprep.subr.bf16.mxu0 0
    %108 = vmatpush1.bf16.msra.mxu0 0
    %109 = vmatprep.mubr.bf16.mxu0 0
    %110 = vmatmul.mubr.bf16.gmra.mrb[0].mxu0 %v75
    %v111 = vpop.f32.mrb[0].mxu0
    %v112 = vadd.f32 0.0, %v111
    %v113 = vpop.f32.mrb[0].mxu0
    %v114 = vpop.f32.mrb[0].mxu0
    %v115 = vadd.f32 0.0, %v114
    %v116 = vpop.f32.mrb[0].mxu0
    %117 = vdwg.mxu0
    %v118 = vadd.f32 %v48, %v112
    %v119 = vadd.f32 %v49, %v115
    %120 = vst.msk [vmem:[#allocation2] sm:$0xff] %vm73, %v118
    %121 = vst.msk [vmem:[#allocation2 + $0x8] sm:$0xff] %vm73, %v119
    // Predicated region
    $region22: #{tpu_custom_call.1} parent=1 // pred_check
      %p122 = pneg %p41
    $region23: #{tpu_custom_call.1} parent=1 // pred_check_branch
      %124 = sbr.rel (%p122) target = $region25
    $region24: #{tpu_custom_call.1} parent=1 // pred_region
      %v125 = vld [vmem:[#allocation2] sm:$0xff]
      %v126 = vld [vmem:[#allocation2 + $0x8] sm:$0xff]
      %v127 = vpack.c.bf16 %v126, %v125
      %v129 = vunpack.c.l.b16 %v127
      %v130 = vunpack.c.h.b16 %v127
      %v131 = vpack.c.b16 %v129, %v129
      %v132 = vpack.c.b16 %v130, %v130
      %vm135 = vcmask 257024
      %136 = vst.msk [vmem:[#allocation8] sm:$0xf] %vm135, %v131
      %137 = vst.msk [vmem:[#allocation8 + $0x4] sm:$0xf] %vm135, %v132
    $region25: #{tpu_custom_call.1} parent=1 // pred_fallthru
      _
    // Predicated region
    $region26: #{tpu_custom_call.1} parent=1 // pred_check
      _
    $region27: #{tpu_custom_call.1} parent=1 // pred_check_branch
      %139 = sbr.rel (0) target = $region29
    $region28: #{tpu_custom_call.1} parent=1 // pred_region
      %s141 = ssub.s32 128, 128
      %142 = vsyncadd [#allocation5], %s141
      %s143 = sshll.u32 [#allocation8], 4
      %s144 = int_to_ptr.vmem [resolvable:$true] %s143
      %149 = dma.vmem_to_hbm [thread:$0]  %s144, 128, %s2, [#allocation5], 64, 64, 4
    $region29: #{tpu_custom_call.1} parent=1 // pred_fallthru
      _
    // Predicated region
    $region30: #{tpu_custom_call.1} parent=1 // pred_check
      _
    $region31: #{tpu_custom_call.1} parent=1 // pred_check_branch
      %151 = sbr.rel (0) target = $region33
    $region32: #{tpu_custom_call.1} parent=1 // pred_region
      %152 = dma.done [#allocation5], 128
    $region33: #{tpu_custom_call.1} parent=1 // pred_fallthru
      _
    %153 = vsyncpa [#allocation4], 1
    %154 = vsyncpa [#allocation7], 1
    %155 = vsyncpa [#allocation5], 1

</llo_original>
